<compile_context>
chip_gen: v6e
topology: v6e:2x2x1
jax: 0.10.0
libtpu: 0.0.40
codegen_flags: <defaults>
</compile_context>

<pallas_src>
import numpy as np
import jax
import jax.numpy as jnp
from jax.experimental import pallas as pl
from jax.experimental.pallas import tpu as pltpu


# ----------------------------------------------------------------------------
# Buffer setup (glue, plain NumPy) — deterministic, matches the PyTorch module.
# ----------------------------------------------------------------------------
def get_sinusoid_encoding_table(n_position: int, d_hid: int) -> jnp.ndarray:
    """Reproduces PositionalEncoding._get_sinusoid_encoding_table exactly
    (sin applied to both even and odd columns — the reference never uses cos)."""
    positions = np.arange(n_position, dtype=np.float64)[:, None]        # (P, 1)
    dim_i = np.arange(d_hid, dtype=np.float64)[None, :]                 # (1, D)
    angle_rates = 1.0 / np.power(10000.0, 2.0 * (dim_i // 2) / d_hid)   # (1, D)
    table = np.sin(positions * angle_rates)
    return jnp.asarray(table[None, :, :], dtype=jnp.float32)            # (1, P, D)


# ----------------------------------------------------------------------------
# Pallas kernel: elementwise add of the positional table (hot path).
# ----------------------------------------------------------------------------
def _add_pos_kernel(x_ref, pos_ref, o_ref):
    # x_ref/o_ref: (TB, TR, D) tile; pos_ref: (1, TR, D), broadcast over TB.
    o_ref[...] = x_ref[...] + pos_ref[...]


_TARGET_BLOCK_BYTES = 4 * 1024 * 1024          # ~4 MiB per x/out block
_VMEM_LIMIT_BYTES = 40 * 1024 * 1024           # <= 48 MiB: safe on v7x's 64 MiB
_MIN_PALLAS_ELEMS_DEFAULT = 512 * 1024         # below this, XLA fused add wins


def _pick_tiles(B: int, R: int, C: int, itemsize: int):
    """Choose (TB, TR): row tile ~target bytes, then block batch if undersized."""
    row_mult = {4: 8, 2: 16, 1: 32}.get(itemsize, 8)   # packed-sublane multiple
    bytes_per_row = max(C * itemsize, 1)
    target_rows = max(row_mult, _TARGET_BLOCK_BYTES // bytes_per_row)
    if R <= row_mult:
        TR = R                                        # full dim — always legal
    else:
        TR = min(R, (target_rows // row_mult) * row_mult)
        TR = max(TR, row_mult)                        # multiple of 8 — legal
    tile_bytes = TR * bytes_per_row
    TB = int(min(B, max(1, _TARGET_BLOCK_BYTES // tile_bytes)))
    return TB, TR


def positional_encoding_forward(x: jnp.ndarray, pos_prepared: jnp.ndarray, *,
                                min_pallas_elems: int = _MIN_PALLAS_ELEMS_DEFAULT,
                                donate_x: bool = False) -> jnp.ndarray:
    """x: (B, L, D); pos_prepared: (1, L, D) already sliced & cast to x.dtype."""
    B, L, D = x.shape
    assert pos_prepared.shape == (1, L, D), (
        f"prepared pos table shape {pos_prepared.shape} != (1, {L}, {D})")
    assert pos_prepared.dtype == x.dtype

    if x.size <= min_pallas_elems:
        # Tiny-shape fallback: launch + per-step overhead dominates, and a
        # standalone pallas_call would block XLA from fusing this add.
        return x + pos_prepared

    itemsize = jnp.dtype(x.dtype).itemsize
    TB, TR = _pick_tiles(B, L, D, itemsize)
    grid = (pl.cdiv(L, TR), pl.cdiv(B, TB))   # batch innermost: pos re-used across B

    cost = pl.CostEstimate(
        flops=B * L * D,
        transcendentals=0,
        bytes_accessed=(2 * B + 1) * L * D * itemsize,
    )

    kwargs = {}
    if donate_x:
        # Write the output in place of x (only when the caller no longer needs x,
        # otherwise XLA inserts a copy and this becomes a pessimization).
        kwargs["input_output_aliases"] = {0: 0}

    out = pl.pallas_call(
        _add_pos_kernel,
        out_shape=jax.ShapeDtypeStruct((B, L, D), x.dtype),
        grid_spec=pltpu.PrefetchScalarGridSpec(
            num_scalar_prefetch=0,
            grid=grid,
            in_specs=[
                pl.BlockSpec((TB, TR, D), lambda l, b: (b, l, 0)),  # x
                pl.BlockSpec((1, TR, D), lambda l, b: (0, l, 0)),   # pos (const over b)
            ],
            out_specs=pl.BlockSpec((TB, TR, D), lambda l, b: (b, l, 0)),
        ),
        compiler_params=pltpu.CompilerParams(
            dimension_semantics=("parallel", "parallel"),  # shard across v7x's 2 TCs
            vmem_limit_bytes=_VMEM_LIMIT_BYTES,
        ),
        cost_estimate=cost,
        **kwargs,
    )(x, pos_prepared)

    return out


# ----------------------------------------------------------------------------
# Module-style wrapper: caches the sliced / dtype-cast table per (L, dtype).
# ----------------------------------------------------------------------------
class PositionalEncoding:
    def __init__(self, d_hid: int, n_position: int = 200):
        self.n_position = n_position
        self.d_hid = d_hid
        self.pos_table = get_sinusoid_encoding_table(n_position, d_hid)  # fp32 (1,P,D)
        self._cache = {}

    def _prepared(self, L: int, dtype) -> jnp.ndarray:
        key = (L, jnp.dtype(dtype).name)
        if key not in self._cache:
            # One-time slice + cast; avoids a per-call slice/convert HBM pass.
            # (Cast to x.dtype: tiny deviation from PyTorch's fp32-buffer add
            #  when x is bf16/fp8 — documented, negligible for this table.)
            self._cache[key] = jnp.asarray(self.pos_table[:, :L, :], dtype=dtype)
        return self._cache[key]

    def __call__(self, x: jnp.ndarray, **kwargs) -> jnp.ndarray:
        B, L, D = x.shape
        assert L <= self.n_position, (
            f"sequence length {L} exceeds n_position={self.n_position}")
        assert D == self.d_hid, f"hidden dim {D} != d_hid={self.d_hid}"
        return positional_encoding_forward(x, self._prepared(L, x.dtype), **kwargs)


# ----------------------------------------------------------------------------
# Reference (pure JAX) for correctness check.
# ----------------------------------------------------------------------------
def positional_encoding_ref(x, pos_table):
    return x + pos_table[:, : x.shape[1], :].astype(x.dtype)


if __name__ == "__main__":
    B, L, D = 2, 8, 32
    n_position = 200

    key = jax.random.PRNGKey(0)
    x = jax.random.normal(key, (B, L, D), dtype=jnp.float32)

    pe = PositionalEncoding(D, n_position)

    # Force the Pallas path even at this tiny demo shape so the kernel is
    # exercised (production calls keep the default fallback threshold).
    out = pe(x, min_pallas_elems=0)
    out = jax.block_until_ready(out)

    ref = positional_encoding_ref(x, pe.pos_table)
    np.testing.assert_allclose(np.asarray(out), np.asarray(ref), rtol=1e-6, atol=1e-6)

    # Also sanity-check the XLA fallback path used for small shapes by default.
    out_fb = jax.block_until_ready(pe(x))
    np.testing.assert_allclose(np.asarray(out_fb), np.asarray(ref), rtol=1e-6, atol=1e-6)

    print("KERNEL_OK")
</pallas_src>

<mosaic_0001>
module attributes {stable_mosaic.version = 11 : i64} {
  func.func @_add_pos_kernel(%arg0: i32, %arg1: i32, %arg2: memref<2x8x32xf32, #tpu.memory_space<vmem>>, %arg3: memref<1x8x32xf32, #tpu.memory_space<vmem>>, %arg4: memref<2x8x32xf32, #tpu.memory_space<vmem>>) attributes {dimension_semantics = [#tpu.dimension_semantics<parallel>, #tpu.dimension_semantics<parallel>], iteration_bounds = array<i64: 1, 1>, scalar_prefetch = 0 : i64, scratch_operands = 0 : i64, tpu.core_type = #tpu.core_type<tc>, window_params = [{transform_indices = @transform_0, window_bounds = array<i64: 2, 8, 32>}, {transform_indices = @transform_1, window_bounds = array<i64: 1, 8, 32>}, {transform_indices = @transform_2, window_bounds = array<i64: 2, 8, 32>}]} {
    %c0 = arith.constant 0 : index
    %c0_0 = arith.constant 0 : index
    %c0_1 = arith.constant 0 : index
    %0 = vector.load %arg2[%c0, %c0_0, %c0_1] : memref<2x8x32xf32, #tpu.memory_space<vmem>>, vector<2x8x32xf32>
    %c0_2 = arith.constant 0 : index
    %c0_3 = arith.constant 0 : index
    %c0_4 = arith.constant 0 : index
    %1 = vector.load %arg3[%c0_2, %c0_3, %c0_4] : memref<1x8x32xf32, #tpu.memory_space<vmem>>, vector<1x8x32xf32>
    %2 = vector.broadcast %1 : vector<1x8x32xf32> to vector<2x8x32xf32>
    %3 = arith.addf %0, %2 : vector<2x8x32xf32>
    %c0_5 = arith.constant 0 : index
    %c0_6 = arith.constant 0 : index
    %c0_7 = arith.constant 0 : index
    %4 = vector.load %arg4[%c0_5, %c0_6, %c0_7] : memref<2x8x32xf32, #tpu.memory_space<vmem>>, vector<2x8x32xf32>
    tpu.vector_store %arg4[%c0_5, %c0_6, %c0_7], %3 {strides = array<i32>} : memref<2x8x32xf32, #tpu.memory_space<vmem>>, vector<2x8x32xf32>,
    return
  }
  func.func @transform_0(%arg0: i32, %arg1: i32) -> (i32, i32, i32) {
    %c0_i32 = arith.constant 0 : i32
    %c0_i32_0 = arith.constant 0 : i32
    return %arg1, %arg0, %c0_i32 : i32, i32, i32
  }
  func.func @transform_1(%arg0: i32, %arg1: i32) -> (i32, i32, i32) {
    %c0_i32 = arith.constant 0 : i32
    %c0_i32_0 = arith.constant 0 : i32
    %c0_i32_1 = arith.constant 0 : i32
    return %c0_i32, %arg0, %c0_i32_0 : i32, i32, i32
  }
  func.func @transform_2(%arg0: i32, %arg1: i32) -> (i32, i32, i32) {
    %c0_i32 = arith.constant 0 : i32
    %c0_i32_0 = arith.constant 0 : i32
    return %arg1, %arg0, %c0_i32 : i32, i32, i32
  }
}

</mosaic_0001>

<llo_original>
// kernel: tpu_custom_call.1
$region0: #{tpu_custom_call.1}
  #allocation0 [shape = 'u32[]', space=smem, size = 0x4, offset = 0x4, fixed_abs, tag = 'smem constant byte address 0x4 - core index']
  #allocation1 [shape = 'u32[144,128]{1,0:T(1,128)}', space=vmem, size = 0x12000, scoped, tag = 'internal scratch']
  %s0 = inlined_call_operand.hbm [shape: f32[2,8,32], index: 0, kind: input, shape index: {}]
  %s1 = inlined_call_operand.hbm [shape: f32[1,8,32], index: 1, kind: input, shape index: {}]
  %s2 = inlined_call_operand.hbm [shape: f32[2,8,32], index: 2, kind: output, shape index: {}]
  %s3 = sld [smem:[#allocation0]]
  $region26: #{tpu_custom_call.1} parent=0
    _
  %s5 = ssub.s32 1, %s3
  %s6 = scalar_select 0, %s5, %s3
  $region1: #{tpu_custom_call.1} parent=0
    #allocation2 [shape = 'u8[8192]{0}', space=vmem, size = 0x2000, scoped, tag = 'input window, operand 0, single buffered']
    #allocation3 [shape = 's32[1]{0}', space=sflag, size = 0x4, scoped, tag = 'scoped memory for tpu_custom_call.1']
    #allocation4 [shape = 's32[1]{0}', space=sflag, size = 0x4, scoped, tag = 'scoped memory for tpu_custom_call.1']
    #allocation5 [shape = 'u8[4096]{0}', space=vmem, size = 0x1000, scoped, tag = 'input window, operand 1, single buffered']
    #allocation6 [shape = 's32[1]{0}', space=sflag, size = 0x4, scoped, tag = 'scoped memory for tpu_custom_call.1']
    #allocation7 [shape = 'u8[8192]{0}', space=vmem, size = 0x2000, scoped, tag = 'output window, operand 0, single buffered']
    %7 = vsyncpa [#allocation3], 0
    %8 = vsyncpa [#allocation6], 0
    %9 = vsyncpa [#allocation4], 0
    // Predicated region
    $region2: #{tpu_custom_call.1} parent=1 // pred_check
      _
    $region3: #{tpu_custom_call.1} parent=1 // pred_check_branch
      %11 = sbr.rel (0) target = $region5
    $region4: #{tpu_custom_call.1} parent=1 // pred_region
      %s13 = ssub.s32 256, 256
      %14 = vsyncadd [#allocation3], %s13
      %s15 = sshll.u32 [#allocation2], 4
      %s16 = int_to_ptr.vmem [resolvable:$true] %s15
      %21 = dma.hbm_to_vmem [thread:$0]  %s0, 256, %s16, [#allocation3], 128, 128, 8
    $region5: #{tpu_custom_call.1} parent=1 // pred_fallthru
      _
    // Predicated region
    $region6: #{tpu_custom_call.1} parent=1 // pred_check
      _
    $region7: #{tpu_custom_call.1} parent=1 // pred_check_branch
      %23 = sbr.rel (0) target = $region9
    $region8: #{tpu_custom_call.1} parent=1 // pred_region
      %s25 = ssub.s32 128, 128
      %26 = vsyncadd [#allocation6], %s25
      %s28 = sshll.u32 [#allocation5], 4
      %s29 = int_to_ptr.vmem [resolvable:$true] %s28
      %31 = dma.hbm_to_vmem [thread:$0]  %s1, 128, %s29, [#allocation6]
    $region9: #{tpu_custom_call.1} parent=1 // pred_fallthru
      _
    // Predicated region
    $region10: #{tpu_custom_call.1} parent=1 // pred_check
      _
    $region11: #{tpu_custom_call.1} parent=1 // pred_check_branch
      %33 = sbr.rel (0) target = $region13
    $region12: #{tpu_custom_call.1} parent=1 // pred_region
      %34 = dma.done [#allocation3], 256
    $region13: #{tpu_custom_call.1} parent=1 // pred_fallthru
      _
    // Predicated region
    $region14: #{tpu_custom_call.1} parent=1 // pred_check
      _
    $region15: #{tpu_custom_call.1} parent=1 // pred_check_branch
      %36 = sbr.rel (0) target = $region17
    $region16: #{tpu_custom_call.1} parent=1 // pred_region
      %37 = dma.done [#allocation6], 128
    $region17: #{tpu_custom_call.1} parent=1 // pred_fallthru
      _
    %v38 = vld [vmem:[#allocation2] sm:$0xff]
    %v39 = vld [vmem:[#allocation2 + $0x8] sm:$0xff]
    %v40 = vld [vmem:[#allocation5] sm:$0xff]
    %v41 = vadd.f32 %v38, %v40
    %v42 = vadd.f32 %v39, %v40
    %vm43 = vcmask 261120
    %44 = vst.msk [vmem:[#allocation7] sm:$0xff] %vm43, %v41
    %45 = vst.msk [vmem:[#allocation7 + $0x8] sm:$0xff] %vm43, %v42
    // Predicated region
    $region18: #{tpu_custom_call.1} parent=1 // pred_check
      _
    $region19: #{tpu_custom_call.1} parent=1 // pred_check_branch
      %47 = sbr.rel (0) target = $region21
    $region20: #{tpu_custom_call.1} parent=1 // pred_region
      %s49 = ssub.s32 256, 256
      %50 = vsyncadd [#allocation4], %s49
      %s51 = sshll.u32 [#allocation7], 4
      %s52 = int_to_ptr.vmem [resolvable:$true] %s51
      %57 = dma.vmem_to_hbm [thread:$0]  %s52, 256, %s2, [#allocation4], 128, 128, 8
    $region21: #{tpu_custom_call.1} parent=1 // pred_fallthru
      _
    // Predicated region
    $region22: #{tpu_custom_call.1} parent=1 // pred_check
      _
    $region23: #{tpu_custom_call.1} parent=1 // pred_check_branch
      %59 = sbr.rel (0) target = $region25
    $region24: #{tpu_custom_call.1} parent=1 // pred_region
      %60 = dma.done [#allocation4], 256
    $region25: #{tpu_custom_call.1} parent=1 // pred_fallthru
      _
    %61 = vsyncpa [#allocation3], 1
    %62 = vsyncpa [#allocation6], 1
    %63 = vsyncpa [#allocation4], 1

</llo_original>
